<compile_context>
chip_gen: v5e
topology: v5e:2x2
jax: 0.10.0
libtpu: 0.0.40
codegen_flags: <defaults>
</compile_context>

<pallas_src>
import functools

import jax
import jax.numpy as jnp
from jax import lax
from jax.experimental import pallas as pl
from jax.experimental.pallas import tpu as pltpu


# ----------------------------- Pallas kernels ------------------------------ #
def _demod_weight_kernel(w_ref, o_ref):
    """Per-output-channel demodulation, computed once (single-block prologue).

    w_ref: (K, O_pad) raw weight, f32, K = C*KH*KW.  Padded columns are zero,
    so rsqrt(0 + eps) * 0 == 0 and they stay zero.
    o_ref: (K, O_pad) demodulated weight in the compute dtype.
    """
    w = w_ref[...]                                                  # (K, O_pad)
    demod = lax.rsqrt(jnp.sum(w * w, axis=0, keepdims=True) + 1e-8)  # (1, O_pad)
    o_ref[...] = (w * demod).astype(o_ref.dtype)


def _matmul_kernel(w_ref, p_ref, o_ref):
    """One M-tile of the conv-as-matmul.

    w_ref: (K, O_pad)   demodulated weight, resident across the grid.
    p_ref: (TM, K)      im2col patch tile.
    o_ref: (TM, O_pad)  lane-dense output tile (O_pad multiple of 128).
    """
    o_ref[...] = jnp.dot(
        p_ref[...], w_ref[...], preferred_element_type=jnp.float32
    ).astype(o_ref.dtype)


# ------------------------------ JAX wrapper -------------------------------- #
def _round_up(x, m):
    return ((x + m - 1) // m) * m


def _im2col(x, kh, kw, stride, padding, dilation):
    """x: (B, C, H, W) -> patches (B*OH*OW, C*kh*kw), built directly in
    (b, oh, ow) x (c, ki, kj) order (no transpose of the big patch matrix)."""
    B, C, H, W = x.shape
    if padding:
        x = jnp.pad(x, ((0, 0), (0, 0), (padding, padding), (padding, padding)))
        H += 2 * padding
        W += 2 * padding
    OH = (H - (kh - 1) * dilation - 1) // stride + 1
    OW = (W - (kw - 1) * dilation - 1) // stride + 1
    x_nhwc = jnp.transpose(x, (0, 2, 3, 1))            # small: only the input
    cols = []
    for ki in range(kh):
        for kj in range(kw):
            sl = x_nhwc[
                :,
                ki * dilation : ki * dilation + (OH - 1) * stride + 1 : stride,
                kj * dilation : kj * dilation + (OW - 1) * stride + 1 : stride,
                :,
            ]                                           # (B, OH, OW, C)
            cols.append(sl)
    # (B, OH, OW, C, kh*kw): last-dim flatten is c*(kh*kw) + (ki*kw + kj),
    # matching weight.reshape(O, C*KH*KW) column ordering.
    patches = jnp.stack(cols, axis=-1).reshape(B * OH * OW, C * kh * kw)
    return patches, OH, OW


@functools.partial(
    jax.jit,
    static_argnames=("stride", "padding", "dilation", "tm", "compute_dtype"),
)
def demodulated_conv2d(
    x,
    weight,
    bias=None,
    *,
    stride=1,
    padding=0,
    dilation=1,
    tm=512,
    compute_dtype=jnp.float32,
):
    """x: (B, C, H, W) NCHW f32; weight: (1, O, C, KH, KW) f32.

    Returns (B, O, OH, OW) NCHW, matching PyTorch DemodulatedConv2d.forward.
    `compute_dtype=jnp.bfloat16` runs the MXU in bf16 (f32 accumulation and
    f32 demod reduction)."""
    B, C, H, W = x.shape
    _, O, Cw, KH, KW = weight.shape
    assert Cw == C

    # --- im2col (wrapper-side; see TODO(synk) above for in-kernel fusion) ---
    patches, OH, OW = _im2col(x, KH, KW, stride, padding, dilation)  # (M, K)
    M, K = patches.shape

    # --- flatten + pad weight to lane-dense (K, O_pad) ----------------------
    O_pad = _round_up(O, 128)
    w_ko = weight.reshape(O, K).astype(jnp.float32).T                # (K, O)
    w_ko = jnp.pad(w_ko, ((0, 0), (0, O_pad - O)))                   # (K, O_pad)

    # --- demodulation prologue (single tiny block, hoisted out of M loop) ---
    w_d = pl.pallas_call(
        _demod_weight_kernel,
        out_shape=jax.ShapeDtypeStruct((K, O_pad), compute_dtype),
        in_specs=[pl.BlockSpec((K, O_pad), lambda: (0, 0))],
        out_specs=pl.BlockSpec((K, O_pad), lambda: (0, 0)),
    )(w_ko)

    # --- tile M, pad to a multiple of the tile, cast for the MXU ------------
    tm_eff = _round_up(min(tm, _round_up(M, 8)), 8)
    M_pad = _round_up(M, tm_eff)
    patches = jnp.pad(patches, ((0, M_pad - M), (0, 0))).astype(compute_dtype)
    num_tiles = M_pad // tm_eff

    # --- VMEM budget from the actual footprint (v7x-safe, <= 48 MiB) --------
    cb = jnp.dtype(compute_dtype).itemsize
    footprint = (
        2 * tm_eff * K * cb          # patch tile, double-buffered
        + 2 * K * O_pad * cb         # resident weight (conservatively x2)
        + 2 * tm_eff * O_pad * 4     # output tile, double-buffered
    )
    vmem_limit = int(min(max(2 * footprint + (4 << 20), 16 << 20), 48 << 20))

    cost = pl.CostEstimate(
        flops=2 * M_pad * K * O_pad,
        transcendentals=0,
        bytes_accessed=M_pad * K * cb + K * O_pad * cb + M_pad * O_pad * 4,
    )

    out_flat = pl.pallas_call(
        _matmul_kernel,
        out_shape=jax.ShapeDtypeStruct((M_pad, O_pad), jnp.float32),
        grid=(num_tiles,),
        in_specs=[
            pl.BlockSpec((K, O_pad), lambda i: (0, 0)),      # weight resident
            pl.BlockSpec((tm_eff, K), lambda i: (i, 0)),     # patch tile
        ],
        out_specs=pl.BlockSpec((tm_eff, O_pad), lambda i: (i, 0)),
        compiler_params=pltpu.CompilerParams(
            dimension_semantics=("parallel",),   # v7x: shard M over both TCs
            vmem_limit_bytes=vmem_limit,
        ),
        cost_estimate=cost,
    )(w_d, patches)

    # (M, O) rows are ordered (b, oh, ow) -> back to NCHW.
    out = out_flat[:M, :O].reshape(B, OH, OW, O).transpose(0, 3, 1, 2)
    if bias is not None:
        out = out + bias.reshape(1, O, 1, 1)   # tiny; fused by XLA
    return out


# Pure-JAX reference (lax conv) for a correctness check.
def _reference(x, weight, *, stride=1, padding=0, dilation=1):
    _, O, C, KH, KW = weight.shape
    w = weight[0].astype(jnp.float32)                         # (O, C, KH, KW)
    demod = lax.rsqrt(jnp.sum(w * w, axis=(1, 2, 3), keepdims=True) + 1e-8)
    w_d = w * demod
    return lax.conv_general_dilated(
        x.astype(jnp.float32),
        w_d,
        window_strides=(stride, stride),
        padding=[(padding, padding), (padding, padding)],
        rhs_dilation=(dilation, dilation),
        dimension_numbers=("NCHW", "OIHW", "NCHW"),
    )


if __name__ == "__main__":
    # Module config: in_channel=4, out_channel=8, kernel_size=3, stride=1,
    # padding=0, dilation=1, bias=False (defaults).
    B, C, H, W = 2, 4, 16, 16
    O, KH, KW = 8, 3, 3

    key = jax.random.PRNGKey(0)
    k_w, k_x = jax.random.split(key)
    weight = jax.random.normal(k_w, (1, O, C, KH, KW), dtype=jnp.float32)
    x = jax.random.normal(k_x, (B, C, H, W), dtype=jnp.float32)

    # f32 path; tm=128 so the small test exercises a multi-step pipelined grid.
    out = jax.block_until_ready(
        demodulated_conv2d(x, weight, stride=1, padding=0, dilation=1, tm=128)
    )
    ref = jax.block_until_ready(_reference(x, weight, stride=1, padding=0, dilation=1))
    assert out.shape == (B, O, H - KH + 1, W - KW + 1), out.shape
    assert jnp.allclose(out, ref, atol=1e-4, rtol=1e-4), "mismatch vs reference (f32)"

    # Strided + padded config.
    out2 = jax.block_until_ready(
        demodulated_conv2d(x, weight, stride=2, padding=1, dilation=1, tm=128)
    )
    ref2 = jax.block_until_ready(_reference(x, weight, stride=2, padding=1, dilation=1))
    assert out2.shape == ref2.shape, (out2.shape, ref2.shape)
    assert jnp.allclose(out2, ref2, atol=1e-4, rtol=1e-4), "mismatch vs reference (strided)"

    # bf16 MXU path (demod reduction + accumulation stay f32); loose tolerance.
    out_bf16 = jax.block_until_ready(
        demodulated_conv2d(
            x, weight, stride=1, padding=0, dilation=1, tm=128,
            compute_dtype=jnp.bfloat16,
        )
    )
    assert jnp.allclose(out_bf16, ref, atol=1e-1, rtol=1e-1), "mismatch vs reference (bf16)"

    print("KERNEL_OK")
</pallas_src>

<mosaic_0001>
module attributes {stable_mosaic.version = 11 : i64} {
  func.func @_matmul_kernel(%arg0: i32, %arg1: memref<36x128xf32, #tpu.memory_space<vmem>>, %arg2: memref<128x36xf32, #tpu.memory_space<vmem>>, %arg3: memref<128x128xf32, #tpu.memory_space<vmem>>) attributes {dimension_semantics = [#tpu.dimension_semantics<parallel>], iteration_bounds = array<i64: 4>, scalar_prefetch = 0 : i64, scratch_operands = 0 : i64, tpu.core_type = #tpu.core_type<tc>, window_params = [{pipeline_mode = #tpu.pipeline_mode<synchronous>, transform_indices = @transform_0, window_bounds = array<i64: 36, 128>}, {transform_indices = @transform_1, window_bounds = array<i64: 128, 36>}, {transform_indices = @transform_2, window_bounds = array<i64: 128, 128>}]} {
    %c0 = arith.constant 0 : index
    %c0_0 = arith.constant 0 : index
    %0 = vector.load %arg2[%c0, %c0_0] : memref<128x36xf32, #tpu.memory_space<vmem>>, vector<128x36xf32>
    %c0_1 = arith.constant 0 : index
    %c0_2 = arith.constant 0 : index
    %1 = vector.load %arg1[%c0_1, %c0_2] : memref<36x128xf32, #tpu.memory_space<vmem>>, vector<36x128xf32>
    %cst = arith.constant dense<0.000000e+00> : vector<128x128xf32>
    %2 = tpu.matmul %0, %1, %cst {dimension_numbers = #tpu.dot_dimension_numbers<[1], [0], [0], [1], [0, 0, 1, 1], [], []>} : vector<128x36xf32>, vector<36x128xf32>, vector<128x128xf32> -> vector<128x128xf32>
    %c0_3 = arith.constant 0 : index
    %c0_4 = arith.constant 0 : index
    %3 = vector.load %arg3[%c0_3, %c0_4] : memref<128x128xf32, #tpu.memory_space<vmem>>, vector<128x128xf32>
    tpu.vector_store %arg3[%c0_3, %c0_4], %2 {strides = array<i32>} : memref<128x128xf32, #tpu.memory_space<vmem>>, vector<128x128xf32>,
    return
  }
  func.func @transform_0(%arg0: i32) -> (i32, i32) {
    %c0_i32 = arith.constant 0 : i32
    %c0_i32_0 = arith.constant 0 : i32
    %c0_i32_1 = arith.constant 0 : i32
    return %c0_i32, %c0_i32_0 : i32, i32
  }
  func.func @transform_1(%arg0: i32) -> (i32, i32) {
    %c0_i32 = arith.constant 0 : i32
    %c0_i32_0 = arith.constant 0 : i32
    return %arg0, %c0_i32 : i32, i32
  }
  func.func @transform_2(%arg0: i32) -> (i32, i32) {
    %c0_i32 = arith.constant 0 : i32
    %c0_i32_0 = arith.constant 0 : i32
    return %arg0, %c0_i32 : i32, i32
  }
}

module attributes {stable_mosaic.version = 11 : i64} {
  func.func @_demod_weight_kernel(%arg0: memref<36x128xf32, #tpu.memory_space<vmem>>, %arg1: memref<36x128xf32, #tpu.memory_space<vmem>>) attributes {dimension_semantics = [], scalar_prefetch = 0 : i64, scratch_operands = 0 : i64, tpu.core_type = #tpu.core_type<tc>} {
    %c0 = arith.constant 0 : index
    %c0_0 = arith.constant 0 : index
    %0 = vector.load %arg0[%c0, %c0_0] : memref<36x128xf32, #tpu.memory_space<vmem>>, vector<36x128xf32>
    %1 = arith.mulf %0, %0 : vector<36x128xf32>
    %cst = arith.constant dense<0.000000e+00> : vector<128xf32>
    %2 = vector.multi_reduction <add>, %1, %cst [0] : vector<36x128xf32> to vector<128xf32>
    %3 = vector.shape_cast %2 : vector<128xf32> to vector<1x128xf32>
    %cst_1 = arith.constant 9.99999993E-9 : f32
    %4 = vector.broadcast %cst_1 : f32 to vector<1x128xf32>
    %5 = arith.addf %3, %4 : vector<1x128xf32>
    %6 = math.rsqrt %5 : vector<1x128xf32>
    %7 = vector.broadcast %6 : vector<1x128xf32> to vector<36x128xf32>
    %8 = arith.mulf %0, %7 : vector<36x128xf32>
    %c0_2 = arith.constant 0 : index
    %c0_3 = arith.constant 0 : index
    %9 = vector.load %arg1[%c0_2, %c0_3] : memref<36x128xf32, #tpu.memory_space<vmem>>, vector<36x128xf32>
    tpu.vector_store %arg1[%c0_2, %c0_3], %8 {strides = array<i32>} : memref<36x128xf32, #tpu.memory_space<vmem>>, vector<36x128xf32>,
    return
  }
}

</mosaic_0001>

<llo_original>
// kernel: demodulated_conv2d.2
$region0: #{demodulated_conv2d.2}
  #allocation0 [shape = 'u32[]', space=smem, size = 0x4, offset = 0x4, fixed_abs, tag = 'smem constant byte address 0x4 - core index']
  #allocation1 [shape = 'u32[72,128]{1,0:T(1,128)}', space=vmem, size = 0x9000, scoped, tag = 'internal scratch']
  %s0 = inlined_call_operand.vmem [shape: f32[36,128], index: 0, kind: input, shape index: {}]
  %s1 = inlined_call_operand.vmem [shape: f32[36,128], index: 1, kind: output, shape index: {}]
  %s2 = sld [smem:[#allocation0]]
  $region14: #{demodulated_conv2d.2} parent=0
    _
  %s4 = ssub.s32 1, %s2
  %s5 = scalar_select 0, %s4, %s2
  // Predicated region
  $region2: #{demodulated_conv2d.2} parent=0 // pred_check
    _
  $region3: #{demodulated_conv2d.2} parent=0 // pred_check_branch
    %7 = sbr.rel (0) target = $region5
  $region4: #{demodulated_conv2d.2} parent=0 // pred_region
    _
  $region5: #{demodulated_conv2d.2} parent=0 // pred_fallthru
    _
  %v8 = vld [vmem:[%s0] sm:$0xff]
  %v9 = vld [vmem:[%s0 + $0x8] sm:$0xff]
  %v10 = vld [vmem:[%s0 + $0x10] sm:$0xff]
  %v11 = vld [vmem:[%s0 + $0x18] sm:$0xff]
  %v12 = vld [vmem:[%s0 + $0x20] sm:$0xf]
  %v13 = vmul.f32 %v8, %v8
  %v14 = vmul.f32 %v9, %v9
  %v15 = vmul.f32 %v10, %v10
  %v16 = vmul.f32 %v11, %v11
  %v17 = vmul.f32 %v12, %v12
  %v18 = vadd.f32 %v13, %v14
  %v19 = vadd.f32 %v18, %v15
  %v20 = vadd.f32 %v19, %v16
  %vm21 = vcmask 1043456
  %v22 = vsel %vm21, %v17, 0.0
  %v23 = vadd.f32 %v20, %v22
  %v24 = vrot.slane %v23, 4
  %v25 = vadd.f32 %v23, %v24
  %v26 = vrot.slane %v25, 2
  %v27 = vadd.f32 %v25, %v26
  %v28 = vrot.slane %v27, 1
  %v29 = vadd.f32 %v27, %v28
  %v30 = vadd.f32 %v29, 1e-08
  %v31 = vrsqrt.pop %v30
  %v32 = vmul.f32 %v31, %v30
  %v33 = vmul.f32 %v32, %v31
  %v34 = vmul.f32 0.5, %v33
  %v35 = vsub.f32 1.5, %v34
  %v36 = vmul.f32 %v31, %v35
  %vm37 = vweird.f32 %v30
  %vm38 = vweird.f32 %v31
  %vm39 = vmor %vm37, %vm38
  %v40 = vsel %vm39, %v31, %v36
  %v41 = vmul.f32 %v8, %v40
  %v42 = vmul.f32 %v9, %v40
  %v43 = vmul.f32 %v10, %v40
  %v44 = vmul.f32 %v11, %v40
  %v45 = vmul.f32 %v12, %v40
  %46 = vst [vmem:[%s1] sm:$0xff] %v41
  %47 = vst [vmem:[%s1 + $0x8] sm:$0xff] %v42
  %48 = vst [vmem:[%s1 + $0x10] sm:$0xff] %v43
  %49 = vst [vmem:[%s1 + $0x18] sm:$0xff] %v44
  %50 = vst [vmem:[%s1 + $0x20] sm:$0xf] %v45
  // Predicated region
  $region6: #{demodulated_conv2d.2} parent=0 // pred_check
    _
  $region7: #{demodulated_conv2d.2} parent=0 // pred_check_branch
    %52 = sbr.rel (0) target = $region9
  $region8: #{demodulated_conv2d.2} parent=0 // pred_region
    _
  $region9: #{demodulated_conv2d.2} parent=0 // pred_fallthru
    _
  // Predicated region
  $region10: #{demodulated_conv2d.2} parent=0 // pred_check
    _
  $region11: #{demodulated_conv2d.2} parent=0 // pred_check_branch
    %54 = sbr.rel (0) target = $region13
  $region12: #{demodulated_conv2d.2} parent=0 // pred_region
    _
  $region13: #{demodulated_conv2d.2} parent=0 // pred_fallthru
    _

// kernel: demodulated_conv2d.3
$region0: #{demodulated_conv2d.3}
  #allocation0 [shape = 'u32[]', space=smem, size = 0x4, offset = 0x4, fixed_abs, tag = 'smem constant byte address 0x4 - core index']
  #allocation1 [shape = 'u32[72,128]{1,0:T(1,128)}', space=vmem, size = 0x9000, scoped, tag = 'internal scratch']
  %s0 = inlined_call_operand.vmem [shape: f32[36,128], index: 0, kind: input, shape index: {}]
  %s1 = inlined_call_operand.vmem [shape: f32[512,36], index: 1, kind: input, shape index: {}]
  %s2 = inlined_call_operand.vmem [shape: f32[512,128], index: 2, kind: output, shape index: {}]
  %s3 = sld [smem:[#allocation0]]
  $region41: #{demodulated_conv2d.3} parent=0
    _
  %s5 = ssub.s32 1, %s3
  %s6 = scalar_select 0, %s5, %s3
  loop: start=0, step=1, limit=6
  $region2: #{demodulated_conv2d.3} parent=0 // loop_pre_header
    _
  $region3: #{demodulated_conv2d.3} parent=0 // loop_header
    %s8 = sphi 0, %s12
    %p9 = scmp.ge.s32.totalorder %s8, 6
    %s16 = sphi 0, %s16
    %s18 = sphi 0, %s16
    %s19 = sphi 0, %s18
    %s33 = sphi 0, %s19
    %s39 = sphi 0, %s41
    %s42 = sphi 0, %s39
    %s43 = sphi 0, %s42
    %s59 = sphi 0, %s43
    %s65 = sphi 0, %s67
    %s68 = sphi 0, %s65
    %s69 = sphi 0, %s68
    %s85 = sphi 0, %s69
  $region4: #{demodulated_conv2d.3} parent=0 // loop_header_branch
    %11 = sbr.rel (%p9) target = $region8
  $region5: #{demodulated_conv2d.3} parent=0 // loop_body
    %s13 = ssub.s32 %s8, 1
    %s14 = ssub.s32 %s8, 2
    %s15 = sadd.s32 %s8, 1
    %s17 = sadd.s32 %s16, 1
    %p20 = scmp.eq.s32.totalorder %s8, 3
    %p21 = scmp.ne.s32.totalorder %s16, %s18
    %p22 = scmp.eq.s32.totalorder %s8, 0
    %p23 = por %p21, %p22
    %p24 = scmp.ne.s32.totalorder %s16, %s18
    %p25 = scmp.eq.s32.totalorder %s13, 3
    %p26 = por %p24, %p25
    %p27 = scmp.ne.s32.totalorder %s18, %s19
    %p28 = scmp.eq.s32.totalorder %s13, 0
    %p29 = por %p27, %p28
    %p30 = scmp.ne.s32.totalorder %s18, %s19
    %p31 = scmp.eq.s32.totalorder %s14, 3
    %p32 = por %p30, %p31
    %p34 = scmp.ne.s32.totalorder %s19, %s33
    %p35 = scmp.eq.s32.totalorder %s14, 0
    %p36 = por %p34, %p35
    %s37 = ssub.s32 %s8, %s15
    %p38 = scmp.eq.s32.totalorder %s37, 0
    %s40 = sadd.s32 %s39, 1
    %s41 = scalar_select %p38, %s39, %s40
    %p44 = pneg %p38
    %p45 = scmp.eq.s32.totalorder %s8, 3
    %p46 = por %p44, %p45
    %p47 = scmp.ne.s32.totalorder %s39, %s42
    %p48 = scmp.eq.s32.totalorder %s8, 0
    %p49 = por %p47, %p48
    %p50 = scmp.ne.s32.totalorder %s39, %s42
    %p51 = scmp.eq.s32.totalorder %s13, 3
    %p52 = por %p50, %p51
    %p53 = scmp.ne.s32.totalorder %s42, %s43
    %p54 = scmp.eq.s32.totalorder %s13, 0
    %p55 = por %p53, %p54
    %p56 = scmp.ne.s32.totalorder %s42, %s43
    %p57 = scmp.eq.s32.totalorder %s14, 3
    %p58 = por %p56, %p57
    %p60 = scmp.ne.s32.totalorder %s43, %s59
    %p61 = scmp.eq.s32.totalorder %s14, 0
    %p62 = por %p60, %p61
    %s63 = ssub.s32 %s8, %s15
    %p64 = scmp.eq.s32.totalorder %s63, 0
    %s66 = sadd.s32 %s65, 1
    %s67 = scalar_select %p64, %s65, %s66
    %p70 = pneg %p64
    %p71 = scmp.eq.s32.totalorder %s8, 3
    %p72 = por %p70, %p71
    %p73 = scmp.ne.s32.totalorder %s65, %s68
    %p74 = scmp.eq.s32.totalorder %s8, 0
    %p75 = por %p73, %p74
    %p76 = scmp.ne.s32.totalorder %s65, %s68
    %p77 = scmp.eq.s32.totalorder %s13, 3
    %p78 = por %p76, %p77
    %p79 = scmp.ne.s32.totalorder %s68, %s69
    %p80 = scmp.eq.s32.totalorder %s13, 0
    %p81 = por %p79, %p80
    %p82 = scmp.ne.s32.totalorder %s68, %s69
    %p83 = scmp.eq.s32.totalorder %s14, 3
    %p84 = por %p82, %p83
    %p86 = scmp.ne.s32.totalorder %s69, %s85
    %p87 = scmp.eq.s32.totalorder %s14, 0
    %p88 = por %p86, %p87
    %p89 = scmp.le.s32.totalorder 1, %s8
    %p90 = scmp.lt.s32.totalorder %s8, 5
    %p91 = pnand %p89, %p90
    %p92 = pneg %p91
    // Predicated region
    $region9: #{demodulated_conv2d.3} parent=5 // pred_check
      _
    $region10: #{demodulated_conv2d.3} parent=5 // pred_check_branch
      %94 = sbr.rel (%p91) target = $region12
    $region11: #{demodulated_conv2d.3} parent=5 // pred_region
      %s95 = ssub.s32 %s8, 1
      // Predicated region
      $region13: #{demodulated_conv2d.3} parent=11 // pred_check
        %p96 = pneg %p29
      $region14: #{demodulated_conv2d.3} parent=11 // pred_check_branch
        %98 = sbr.rel (%p96) target = $region16
      $region15: #{demodulated_conv2d.3} parent=11 // pred_region
        _
      $region16: #{demodulated_conv2d.3} parent=11 // pred_fallthru
        _
    $region12: #{demodulated_conv2d.3} parent=5 // pred_fallthru
      _
    %p99 = scmp.lt.s32.totalorder %s8, 4
    // Predicated region
    $region17: #{demodulated_conv2d.3} parent=5 // pred_check
      %p100 = pneg %p99
    $region18: #{demodulated_conv2d.3} parent=5 // pred_check_branch
      %102 = sbr.rel (%p100) target = $region20
    $region19: #{demodulated_conv2d.3} parent=5 // pred_region
      // Predicated region
      $region21: #{demodulated_conv2d.3} parent=19 // pred_check
        %p103 = pneg %p49
      $region22: #{demodulated_conv2d.3} parent=19 // pred_check_branch
        %105 = sbr.rel (%p103) target = $region24
      $region23: #{demodulated_conv2d.3} parent=19 // pred_region
        %s106 = smul.u32 16, %s8
        %p107 = scmp.lt.s32.totalorder %s106, 63
        %s108 = scalar_select %p107, %s106, 63
        %s109 = smul.addr %s108, 8
        %s110 = scalar_lea.vmem %s1, %s109
        %s111 = smul.u32 16, %s8
      $region24: #{demodulated_conv2d.3} parent=19 // pred_fallthru
        _
    $region20: #{demodulated_conv2d.3} parent=5 // pred_fallthru
      _
    %p112 = scmp.le.s32.totalorder 1, %s8
    %p113 = scmp.lt.s32.totalorder %s8, 5
    %p114 = pnand %p112, %p113
    %p115 = pneg %p114
    // Predicated region
    $region25: #{demodulated_conv2d.3} parent=5 // pred_check
      _
    $region26: #{demodulated_conv2d.3} parent=5 // pred_check_branch
      %117 = sbr.rel (%p114) target = $region28
    $region27: #{demodulated_conv2d.3} parent=5 // pred_region
      %s118 = ssub.s32 %s8, 1
      %p119 = pneg %p29
      %p120 = pneg %p26
      %s121 = smul.u32 16, %s13
      %p122 = scmp.lt.s32.totalorder %s121, 63
      %s123 = scalar_select %p122, %s121, 63
      %s124 = smul.addr %s123, 8
      %s125 = scalar_lea.vmem %s1, %s124
      %p126 = pneg %p55
      %p127 = pneg %p52
      %p128 = pneg %p81
      %p129 = pneg %p78
      %s130 = smul.u32 16, %s13
      %p131 = scmp.lt.s32.totalorder %s130, 63
      %s132 = scalar_select %p131, %s130, 63
      %s133 = smul.addr %s132, 8
      %s134 = scalar_lea.vmem %s2, %s133
      %s135 = smul.u32 16, %s13
      %p136 = scmp.lt.s32.totalorder %s135, 63
      %s137 = scalar_select %p136, %s135, 63
      %s138 = smul.addr %s137, 8
      %s139 = scalar_lea.vmem %s1, %s138
      %s140 = smul.u32 16, %s13
      %s141 = smul.u32 16, %s13
      %p142 = scmp.lt.s32.totalorder %s141, 63
      %s143 = scalar_select %p142, %s141, 63
      %s144 = smul.addr %s143, 8
      %s145 = scalar_lea.vmem %s2, %s144
      %s146 = smul.u32 16, %s13
      %v147 = vld [vmem:[%s139] sm:$0xff]
      %v148 = vld [vmem:[%s139 + $0x8] sm:$0xff]
      %v149 = vld [vmem:[%s139 + $0x10] sm:$0xff]
      %v150 = vld [vmem:[%s139 + $0x18] sm:$0xff]
      %v151 = vld [vmem:[%s139 + $0x20] sm:$0xff]
      %v152 = vld [vmem:[%s139 + $0x28] sm:$0xff]
      %v153 = vld [vmem:[%s139 + $0x30] sm:$0xff]
      %v154 = vld [vmem:[%s139 + $0x38] sm:$0xff]
      %v155 = vld [vmem:[%s139 + $0x40] sm:$0xff]
      %v156 = vld [vmem:[%s139 + $0x48] sm:$0xff]
      %v157 = vld [vmem:[%s139 + $0x50] sm:$0xff]
      %v158 = vld [vmem:[%s139 + $0x58] sm:$0xff]
      %v159 = vld [vmem:[%s139 + $0x60] sm:$0xff]
      %v160 = vld [vmem:[%s139 + $0x68] sm:$0xff]
      %v161 = vld [vmem:[%s139 + $0x70] sm:$0xff]
      %v162 = vld [vmem:[%s139 + $0x78] sm:$0xff]
      %v163 = vld [vmem:[%s0] sm:$0xff]
      %v164 = vld [vmem:[%s0 + $0x8] sm:$0xff]
      %v165 = vld [vmem:[%s0 + $0x10] sm:$0xff]
      %v166 = vld [vmem:[%s0 + $0x18] sm:$0xff]
      %v167 = vld [vmem:[%s0 + $0x20] sm:$0xf]
      %vm168 = vcmask 293888
      %v170 = vsel %vm168, %v147, 0
      %v173 = vsel %vm168, %v148, 0
      %v176 = vsel %vm168, %v149, 0
      %v179 = vsel %vm168, %v150, 0
      %v182 = vsel %vm168, %v151, 0
      %v185 = vsel %vm168, %v152, 0
      %v188 = vsel %vm168, %v153, 0
      %v191 = vsel %vm168, %v154, 0
      %v194 = vsel %vm168, %v155, 0
      %v197 = vsel %vm168, %v156, 0
      %v200 = vsel %vm168, %v157, 0
      %v203 = vsel %vm168, %v158, 0
      %v206 = vsel %vm168, %v159, 0
      %v209 = vsel %vm168, %v160, 0
      %v212 = vsel %vm168, %v161, 0
      %v215 = vsel %vm168, %v162, 0
      %vm217 = vcmask 1043456
      %v219 = vsel %vm217, %v167, 0
      %221 = vmatpush.msra.mxu0 0.0
      %222 = vmatpush.msra.mxu0 0.0
      %223 = vmatpush.msra.mxu0 0.0
      %224 = vmatpush.msra.mxu0 0.0
      %225 = vmatpush.msra.mxu0 0.0
      %226 = vmatpush.msra.mxu0 0.0
      %227 = vmatpush.msra.mxu0 0.0
      %228 = vmatpush.msra.mxu0 0.0
      %229 = vmatpush.msra.mxu0 0.0
      %230 = vmatpush.msra.mxu0 0.0
      %231 = vmatpush.msra.mxu0 0.0
      %232 = vmatpush.msra.mxu0 %v219
      %233 = vmatpush.msra.mxu0 %v166
      %234 = vmatpush.msra.mxu0 %v165
      %235 = vmatpush.msra.mxu0 %v164
      %236 = vmatpush.msra.mxu0 %v163
      %237 = vmatmul.f32.gmra.mxu0 %v170
      %v238 = vpop.f32.mrf.mxu0
      %v239 = vadd.f32 0.0, %v238
      %240 = vmatmul.f32.gmra.mxu0 %v173
      %v241 = vpop.f32.mrf.mxu0
      %v242 = vadd.f32 0.0, %v241
      %243 = vmatmul.f32.gmra.mxu0 %v176
      %v244 = vpop.f32.mrf.mxu0
      %v245 = vadd.f32 0.0, %v244
      %246 = vmatmul.f32.gmra.mxu0 %v179
      %v247 = vpop.f32.mrf.mxu0
      %v248 = vadd.f32 0.0, %v247
      %249 = vmatmul.f32.gmra.mxu0 %v182
      %v250 = vpop.f32.mrf.mxu0
      %v251 = vadd.f32 0.0, %v250
      %252 = vmatmul.f32.gmra.mxu0 %v185
      %v253 = vpop.f32.mrf.mxu0
      %v254 = vadd.f32 0.0, %v253
      %255 = vmatmul.f32.gmra.mxu0 %v188
      %v256 = vpop.f32.mrf.mxu0
      %v257 = vadd.f32 0.0, %v256
      %258 = vmatmul.f32.gmra.mxu0 %v191
      %v259 = vpop.f32.mrf.mxu0
      %v260 = vadd.f32 0.0, %v259
      %261 = vmatmul.f32.gmra.mxu0 %v194
      %v262 = vpop.f32.mrf.mxu0
      %v263 = vadd.f32 0.0, %v262
      %264 = vmatmul.f32.gmra.mxu0 %v197
      %v265 = vpop.f32.mrf.mxu0
      %v266 = vadd.f32 0.0, %v265
      %267 = vmatmul.f32.gmra.mxu0 %v200
      %v268 = vpop.f32.mrf.mxu0
      %v269 = vadd.f32 0.0, %v268
      %270 = vmatmul.f32.gmra.mxu0 %v203
      %v271 = vpop.f32.mrf.mxu0
      %v272 = vadd.f32 0.0, %v271
      %273 = vmatmul.f32.gmra.mxu0 %v206
      %v274 = vpop.f32.mrf.mxu0
      %v275 = vadd.f32 0.0, %v274
      %276 = vmatmul.f32.gmra.mxu0 %v209
      %v277 = vpop.f32.mrf.mxu0
      %v278 = vadd.f32 0.0, %v277
      %279 = vmatmul.f32.gmra.mxu0 %v212
      %v280 = vpop.f32.mrf.mxu0
      %v281 = vadd.f32 0.0, %v280
      %282 = vmatmul.f32.gmra.mxu0 %v215
      %v283 = vpop.f32.mrf.mxu0
      %v284 = vadd.f32 0.0, %v283
      %285 = vdwg.mxu0
      %286 = vst [vmem:[%s145] sm:$0xff] %v239
      %287 = vst [vmem:[%s145 + $0x8] sm:$0xff] %v242
      %288 = vst [vmem:[%s145 + $0x10] sm:$0xff] %v245
      %289 = vst [vmem:[%s145 + $0x18] sm:$0xff] %v248
      %290 = vst [vmem:[%s145 + $0x20] sm:$0xff] %v251
      %291 = vst [vmem:[%s145 + $0x28] sm:$0xff] %v254
      %292 = vst [vmem:[%s145 + $0x30] sm:$0xff] %v257
      %293 = vst [vmem:[%s145 + $0x38] sm:$0xff] %v260
      %294 = vst [vmem:[%s145 + $0x40] sm:$0xff] %v263
      %295 = vst [vmem:[%s145 + $0x48] sm:$0xff] %v266
      %296 = vst [vmem:[%s145 + $0x50] sm:$0xff] %v269
      %297 = vst [vmem:[%s145 + $0x58] sm:$0xff] %v272
      %298 = vst [vmem:[%s145 + $0x60] sm:$0xff] %v275
      %299 = vst [vmem:[%s145 + $0x68] sm:$0xff] %v278
      %300 = vst [vmem:[%s145 + $0x70] sm:$0xff] %v281
      %301 = vst [vmem:[%s145 + $0x78] sm:$0xff] %v284
      %s302 = smul.u32 16, %s13
      %p303 = scmp.lt.s32.totalorder %s302, 63
      %s304 = scalar_select %p303, %s302, 63
      %s305 = smul.addr %s304, 8
      %s306 = scalar_lea.vmem %s2, %s305
      // Predicated region
      $region29: #{demodulated_conv2d.3} parent=27 // pred_check
        %p307 = pneg %p78
      $region30: #{demodulated_conv2d.3} parent=27 // pred_check_branch
        %309 = sbr.rel (%p307) target = $region32
      $region31: #{demodulated_conv2d.3} parent=27 // pred_region
        %s310 = smul.u32 16, %s13
      $region32: #{demodulated_conv2d.3} parent=27 // pred_fallthru
        _
    $region28: #{demodulated_conv2d.3} parent=5 // pred_fallthru
      _
    %p311 = scmp.le.s32.totalorder 2, %s8
    // Predicated region
    $region33: #{demodulated_conv2d.3} parent=5 // pred_check
      %p312 = pneg %p311
    $region34: #{demodulated_conv2d.3} parent=5 // pred_check_branch
      %314 = sbr.rel (%p312) target = $region36
    $region35: #{demodulated_conv2d.3} parent=5 // pred_region
      %s315 = ssub.s32 %s8, 2
      // Predicated region
      $region37: #{demodulated_conv2d.3} parent=35 // pred_check
        %p316 = pneg %p84
      $region38: #{demodulated_conv2d.3} parent=35 // pred_check_branch
        %318 = sbr.rel (%p316) target = $region40
      $region39: #{demodulated_conv2d.3} parent=35 // pred_region
        %s319 = smul.u32 16, %s14
        %p320 = scmp.lt.s32.totalorder %s319, 63
        %s321 = scalar_select %p320, %s319, 63
        %s322 = smul.addr %s321, 8
        %s323 = scalar_lea.vmem %s2, %s322
      $region40: #{demodulated_conv2d.3} parent=35 // pred_fallthru
        _
    $region36: #{demodulated_conv2d.3} parent=5 // pred_fallthru
      _
  $region6: #{demodulated_conv2d.3} parent=0 // loop_footer
    %s12 = sadd.s32 1, %s8
  $region7: #{demodulated_conv2d.3} parent=0 // loop_footer_branch
    %7 = sbr.rel target = $region3
  $region8: #{demodulated_conv2d.3} parent=0 // loop_exit
    _

</llo_original>
